<compile_context>
chip_gen: v6e
topology: v6e:2x2x1
jax: 0.10.0
libtpu: 0.0.40
codegen_flags: <defaults>
</compile_context>

<pallas_src>
import jax
import jax.numpy as jnp
from jax.experimental import pallas as pl
from jax.experimental.pallas import tpu as pltpu

HIDDEN_DIM = 14
_SUBLANE = 8
_LANE = 128
_TARGET_TILE_BYTES = 2 << 20     # ~2 MiB of x per grid step (review: 1-4 MiB)
_VMEM_LIMIT_BYTES = 32 << 20     # explicit scoped-VMEM limit; safe on v5e/v6e/v7x


def _round_up(n, m):
    return ((n + m - 1) // m) * m


def _choose_tile_b(batch, in_dim):
    """Byte-targeted, lane-aligned batch tile; >=2 grid steps when batch allows (v7x)."""
    padded = _round_up(batch, _LANE)
    bytes_per_row = 4 * in_dim
    cap = max(_LANE, (_TARGET_TILE_BYTES // bytes_per_row) // _LANE * _LANE)
    tile_b = min(cap, padded)
    # v7x megacore: a 1-step grid leaves the second TensorCore idle; split if possible.
    if tile_b >= padded and padded >= 2 * _LANE:
        tile_b = _round_up((padded + 1) // 2, _LANE)
    return tile_b


def _classifier_kernel(x_ref, w1_ref, b1_ref, w2_ref, b2_ref, o_ref):
    # x_ref : (TILE_B, in_dim)        w1_ref: (hidden_pad, in_dim)
    # b1_ref: (hidden_pad, 1)         w2_ref: (out_dim, hidden_pad)
    # b2_ref: (out_dim, 1)            o_ref : (out_dim, TILE_B)   (lane-dense batch)

    # h^T = W1 @ x^T  -> (hidden_pad, TILE_B); batch lives on the lane axis.
    h = jnp.dot(w1_ref[...], x_ref[...].T, preferred_element_type=jnp.float32)
    h = h + b1_ref[...]                              # lane-broadcast bias
    # sigmoid via tanh identity: one EUP op, no f32 divide.
    h = 0.5 * (jnp.tanh(0.5 * h) + 1.0)

    # logits^T = W2 @ h^T -> (out_dim, TILE_B); zero-padded W2 columns keep this exact.
    logits = jnp.dot(w2_ref[...], h, preferred_element_type=jnp.float32)
    logits = logits + b2_ref[...]

    # softmax over out_dim (axis 0 here == torch dim=1), per-lane so padded/garbage
    # batch lanes never contaminate valid ones.
    m = jnp.max(logits, axis=0, keepdims=True)
    e = jnp.exp(logits - m)
    denom = jnp.sum(e, axis=0, keepdims=True)
    r = pl.reciprocal(denom, approx=True)
    r = r * (2.0 - denom * r)                        # one Newton step -> ~1e-7 rel err
    o_ref[...] = (e * r).astype(o_ref.dtype)


def prepare_params(w1, b1, w2, b2):
    """One-time parameter prep (hoisted out of the per-call hot path).

    Keeps PyTorch's (out, in) orientation (the kernel consumes W1 @ x^T directly),
    zero-pads the hidden dim 14 -> 16 (sublane multiple), and reshapes biases to
    column vectors for lane-broadcast.  Zero-padded W2 columns make the padded
    hidden rows contribute nothing to the logits, so the math stays exact.
    """
    w1 = jnp.asarray(w1, jnp.float32)          # (hidden, in)
    b1 = jnp.asarray(b1, jnp.float32)          # (hidden,)
    w2 = jnp.asarray(w2, jnp.float32)          # (out, hidden)
    b2 = jnp.asarray(b2, jnp.float32)          # (out,)

    hidden = w1.shape[0]
    hidden_pad = _round_up(hidden, _SUBLANE)
    pad = hidden_pad - hidden

    w1_p = jnp.pad(w1, ((0, pad), (0, 0)))                    # (hidden_pad, in)
    b1_p = jnp.pad(b1, (0, pad)).reshape(hidden_pad, 1)       # (hidden_pad, 1)
    w2_p = jnp.pad(w2, ((0, 0), (0, pad)))                    # (out, hidden_pad)
    b2_p = b2.reshape(-1, 1)                                  # (out, 1)
    return w1_p, b1_p, w2_p, b2_p


@jax.jit
def classifier_forward(x, w1_p, b1_p, w2_p, b2_p):
    """x: (B, in_dim) f32; params from prepare_params. Returns (B, out_dim)."""
    x = jnp.asarray(x, jnp.float32)
    batch, in_dim = x.shape
    hidden_pad = w1_p.shape[0]
    out_dim = w2_p.shape[0]

    tile_b = _choose_tile_b(batch, in_dim)
    grid = (pl.cdiv(batch, tile_b),)

    cost = pl.CostEstimate(
        flops=2 * batch * (in_dim * hidden_pad + hidden_pad * out_dim),
        transcendentals=batch * (hidden_pad + out_dim),
        bytes_accessed=4 * (batch * (in_dim + out_dim)
                            + hidden_pad * (in_dim + out_dim + 1) + out_dim),
    )

    out_t = pl.pallas_call(
        _classifier_kernel,
        out_shape=jax.ShapeDtypeStruct((out_dim, batch), jnp.float32),
        grid=grid,
        in_specs=[
            pl.BlockSpec((tile_b, in_dim), lambda i: (i, 0)),        # x: tiled over batch
            pl.BlockSpec((hidden_pad, in_dim), lambda i: (0, 0)),    # W1 (padded): resident
            pl.BlockSpec((hidden_pad, 1), lambda i: (0, 0)),         # b1: resident
            pl.BlockSpec((out_dim, hidden_pad), lambda i: (0, 0)),   # W2 (padded): resident
            pl.BlockSpec((out_dim, 1), lambda i: (0, 0)),            # b2: resident
        ],
        out_specs=pl.BlockSpec((out_dim, tile_b), lambda i: (0, i)),  # lane-dense output slab
        compiler_params=pltpu.CompilerParams(
            dimension_semantics=("parallel",),      # shards batch grid across v7x's 2 TCs
            vmem_limit_bytes=_VMEM_LIMIT_BYTES,
        ),
        cost_estimate=cost,
    )(x, w1_p, b1_p, w2_p, b2_p)

    # Cheap transpose of the tiny (out_dim, B) result back to torch's (B, out_dim).
    return out_t.T


def init_classifier_params(key, in_dim, hidden_dim, out_dim):
    """Deterministic init mirroring nn.Linear's U(-1/sqrt(fan_in), 1/sqrt(fan_in))."""
    k1, k2, k3, k4 = jax.random.split(key, 4)
    lim1 = 1.0 / jnp.sqrt(jnp.float32(in_dim))
    lim2 = 1.0 / jnp.sqrt(jnp.float32(hidden_dim))
    w1 = jax.random.uniform(k1, (hidden_dim, in_dim), jnp.float32, -lim1, lim1)
    b1 = jax.random.uniform(k2, (hidden_dim,), jnp.float32, -lim1, lim1)
    w2 = jax.random.uniform(k3, (out_dim, hidden_dim), jnp.float32, -lim2, lim2)
    b2 = jax.random.uniform(k4, (out_dim,), jnp.float32, -lim2, lim2)
    return w1, b1, w2, b2


def _reference_forward(x, w1, b1, w2, b2):
    h = jax.nn.sigmoid(x @ w1.T + b1)
    logits = h @ w2.T + b2
    return jax.nn.softmax(logits, axis=1)


if __name__ == "__main__":
    key = jax.random.PRNGKey(0)
    kx, kp = jax.random.split(key)

    batch, in_dim, hidden_dim, out_dim = 8, 32, HIDDEN_DIM, 4
    x = jax.random.normal(kx, (batch, in_dim), jnp.float32)
    w1, b1, w2, b2 = init_classifier_params(kp, in_dim, hidden_dim, out_dim)

    # One-time parameter prep (outside the per-call hot path).
    params = prepare_params(w1, b1, w2, b2)

    out = classifier_forward(x, *params)
    jax.block_until_ready(out)

    ref = _reference_forward(x, w1, b1, w2, b2)
    assert out.shape == (batch, out_dim)
    assert jnp.allclose(out, ref, atol=1e-5, rtol=1e-5)
    # rows of a softmax sum to 1
    assert jnp.allclose(jnp.sum(out, axis=1), jnp.ones((batch,)), atol=1e-5)

    print("KERNEL_OK")
</pallas_src>

<mosaic_0001>
module attributes {stable_mosaic.version = 11 : i64} {
  func.func @_classifier_kernel(%arg0: i32, %arg1: memref<128x32xf32, #tpu.memory_space<vmem>>, %arg2: memref<16x32xf32, #tpu.memory_space<vmem>>, %arg3: memref<16x1xf32, #tpu.memory_space<vmem>>, %arg4: memref<4x16xf32, #tpu.memory_space<vmem>>, %arg5: memref<4x1xf32, #tpu.memory_space<vmem>>, %arg6: memref<4x128xf32, #tpu.memory_space<vmem>>) attributes {dimension_semantics = [#tpu.dimension_semantics<parallel>], iteration_bounds = array<i64: 1>, scalar_prefetch = 0 : i64, scratch_operands = 0 : i64, tpu.core_type = #tpu.core_type<tc>, window_params = [{transform_indices = @transform_0, window_bounds = array<i64: 128, 32>}, {pipeline_mode = #tpu.pipeline_mode<synchronous>, transform_indices = @transform_1, window_bounds = array<i64: 16, 32>}, {pipeline_mode = #tpu.pipeline_mode<synchronous>, transform_indices = @transform_2, window_bounds = array<i64: 16, 1>}, {pipeline_mode = #tpu.pipeline_mode<synchronous>, transform_indices = @transform_3, window_bounds = array<i64: 4, 16>}, {pipeline_mode = #tpu.pipeline_mode<synchronous>, transform_indices = @transform_4, window_bounds = array<i64: 4, 1>}, {transform_indices = @transform_5, window_bounds = array<i64: 4, 128>}]} {
    %c0 = arith.constant 0 : index
    %c0_0 = arith.constant 0 : index
    %0 = vector.load %arg2[%c0, %c0_0] : memref<16x32xf32, #tpu.memory_space<vmem>>, vector<16x32xf32>
    %c0_1 = arith.constant 0 : index
    %c0_2 = arith.constant 0 : index
    %1 = vector.load %arg1[%c0_1, %c0_2] : memref<128x32xf32, #tpu.memory_space<vmem>>, vector<128x32xf32>
    %2 = tpu.transpose %1, [1, 0] : vector<128x32xf32> -> vector<32x128xf32>
    %cst = arith.constant dense<0.000000e+00> : vector<16x128xf32>
    %3 = tpu.matmul %0, %2, %cst {dimension_numbers = #tpu.dot_dimension_numbers<[1], [0], [0], [1], [0, 0, 1, 1], [], []>} : vector<16x32xf32>, vector<32x128xf32>, vector<16x128xf32> -> vector<16x128xf32>
    %c0_3 = arith.constant 0 : index
    %c0_4 = arith.constant 0 : index
    %4 = vector.load %arg3[%c0_3, %c0_4] : memref<16x1xf32, #tpu.memory_space<vmem>>, vector<16x1xf32>
    %5 = vector.broadcast %4 : vector<16x1xf32> to vector<16x128xf32>
    %6 = arith.addf %3, %5 : vector<16x128xf32>
    %cst_5 = arith.constant 5.000000e-01 : f32
    %7 = vector.broadcast %cst_5 : f32 to vector<16x128xf32>
    %8 = arith.mulf %7, %6 : vector<16x128xf32>
    %9 = math.tanh %8 : vector<16x128xf32>
    %cst_6 = arith.constant 1.000000e+00 : f32
    %10 = vector.broadcast %cst_6 : f32 to vector<16x128xf32>
    %11 = arith.addf %9, %10 : vector<16x128xf32>
    %cst_7 = arith.constant 5.000000e-01 : f32
    %12 = vector.broadcast %cst_7 : f32 to vector<16x128xf32>
    %13 = arith.mulf %12, %11 : vector<16x128xf32>
    %c0_8 = arith.constant 0 : index
    %c0_9 = arith.constant 0 : index
    %14 = vector.load %arg4[%c0_8, %c0_9] : memref<4x16xf32, #tpu.memory_space<vmem>>, vector<4x16xf32>
    %cst_10 = arith.constant dense<0.000000e+00> : vector<4x128xf32>
    %15 = tpu.matmul %14, %13, %cst_10 {dimension_numbers = #tpu.dot_dimension_numbers<[1], [0], [0], [1], [0, 0, 1, 1], [], []>} : vector<4x16xf32>, vector<16x128xf32>, vector<4x128xf32> -> vector<4x128xf32>
    %c0_11 = arith.constant 0 : index
    %c0_12 = arith.constant 0 : index
    %16 = vector.load %arg5[%c0_11, %c0_12] : memref<4x1xf32, #tpu.memory_space<vmem>>, vector<4x1xf32>
    %17 = vector.broadcast %16 : vector<4x1xf32> to vector<4x128xf32>
    %18 = arith.addf %15, %17 : vector<4x128xf32>
    %cst_13 = arith.constant dense<0xFF800000> : vector<128xf32>
    %19 = vector.multi_reduction <maximumf>, %18, %cst_13 [0] : vector<4x128xf32> to vector<128xf32>
    %20 = vector.shape_cast %19 : vector<128xf32> to vector<1x128xf32>
    %21 = vector.broadcast %20 : vector<1x128xf32> to vector<4x128xf32>
    %22 = arith.subf %18, %21 : vector<4x128xf32>
    %23 = math.exp %22 : vector<4x128xf32>
    %cst_14 = arith.constant dense<0.000000e+00> : vector<128xf32>
    %24 = vector.multi_reduction <add>, %23, %cst_14 [0] : vector<4x128xf32> to vector<128xf32>
    %25 = vector.shape_cast %24 : vector<128xf32> to vector<1x128xf32>
    %26 = tpu.reciprocal %25 {approx = true} : vector<1x128xf32> -> vector<1x128xf32>
    %27 = arith.mulf %25, %26 : vector<1x128xf32>
    %cst_15 = arith.constant 2.000000e+00 : f32
    %28 = vector.broadcast %cst_15 : f32 to vector<1x128xf32>
    %29 = arith.subf %28, %27 : vector<1x128xf32>
    %30 = arith.mulf %26, %29 : vector<1x128xf32>
    %31 = vector.broadcast %30 : vector<1x128xf32> to vector<4x128xf32>
    %32 = arith.mulf %23, %31 : vector<4x128xf32>
    %c0_16 = arith.constant 0 : index
    %c0_17 = arith.constant 0 : index
    %33 = vector.load %arg6[%c0_16, %c0_17] : memref<4x128xf32, #tpu.memory_space<vmem>>, vector<4x128xf32>
    tpu.vector_store %arg6[%c0_16, %c0_17], %32 {strides = array<i32>} : memref<4x128xf32, #tpu.memory_space<vmem>>, vector<4x128xf32>,
    return
  }
  func.func @transform_0(%arg0: i32) -> (i32, i32) {
    %c0_i32 = arith.constant 0 : i32
    %c0_i32_0 = arith.constant 0 : i32
    return %arg0, %c0_i32 : i32, i32
  }
  func.func @transform_1(%arg0: i32) -> (i32, i32) {
    %c0_i32 = arith.constant 0 : i32
    %c0_i32_0 = arith.constant 0 : i32
    %c0_i32_1 = arith.constant 0 : i32
    return %c0_i32, %c0_i32_0 : i32, i32
  }
  func.func @transform_2(%arg0: i32) -> (i32, i32) {
    %c0_i32 = arith.constant 0 : i32
    %c0_i32_0 = arith.constant 0 : i32
    %c0_i32_1 = arith.constant 0 : i32
    return %c0_i32, %c0_i32_0 : i32, i32
  }
  func.func @transform_3(%arg0: i32) -> (i32, i32) {
    %c0_i32 = arith.constant 0 : i32
    %c0_i32_0 = arith.constant 0 : i32
    %c0_i32_1 = arith.constant 0 : i32
    return %c0_i32, %c0_i32_0 : i32, i32
  }
  func.func @transform_4(%arg0: i32) -> (i32, i32) {
    %c0_i32 = arith.constant 0 : i32
    %c0_i32_0 = arith.constant 0 : i32
    %c0_i32_1 = arith.constant 0 : i32
    return %c0_i32, %c0_i32_0 : i32, i32
  }
  func.func @transform_5(%arg0: i32) -> (i32, i32) {
    %c0_i32 = arith.constant 0 : i32
    %c0_i32_0 = arith.constant 0 : i32
    return %c0_i32, %arg0 : i32, i32
  }
}

</mosaic_0001>

<llo_original>
// kernel: classifier_forward.1
$region0: #{classifier_forward.1}
  #allocation0 [shape = 'u32[]', space=smem, size = 0x4, offset = 0x4, fixed_abs, tag = 'smem constant byte address 0x4 - core index']
  #allocation1 [shape = 'u32[144,128]{1,0:T(1,128)}', space=vmem, size = 0x12000, scoped, tag = 'internal scratch']
  %s0 = inlined_call_operand.hbm [shape: f32[8,32], index: 0, kind: input, shape index: {}]
  %s1 = inlined_call_operand.vmem [shape: f32[16,32], index: 1, kind: input, shape index: {}]
  %s2 = inlined_call_operand.vmem [shape: f32[16,1], index: 2, kind: input, shape index: {}]
  %s3 = inlined_call_operand.vmem [shape: f32[4,16], index: 3, kind: input, shape index: {}]
  %s4 = inlined_call_operand.vmem [shape: f32[4,1], index: 4, kind: input, shape index: {}]
  %s5 = inlined_call_operand.hbm [shape: f32[4,8], index: 5, kind: output, shape index: {}]
  %s6 = sld [smem:[#allocation0]]
  $region34: #{classifier_forward.1} parent=0
    _
  %s8 = ssub.s32 1, %s6
  %s9 = scalar_select 0, %s8, %s6
  $region1: #{classifier_forward.1} parent=0
    #allocation2 [shape = 'u8[65536]{0}', space=vmem, size = 0x10000, scoped, tag = 'input window, operand 0, single buffered']
    #allocation3 [shape = 's32[1]{0}', space=sflag, size = 0x4, scoped, tag = 'scoped memory for classifier_forward.1']
    #allocation4 [shape = 's32[1]{0}', space=sflag, size = 0x4, scoped, tag = 'scoped memory for classifier_forward.1']
    #allocation5 [shape = 'u8[2048]{0}', space=vmem, size = 0x800, scoped, tag = 'output window, operand 0, single buffered']
    %10 = vsyncpa [#allocation3], 0
    %11 = vsyncpa [#allocation4], 0
    // Predicated region
    $region2: #{classifier_forward.1} parent=1 // pred_check
      _
    $region3: #{classifier_forward.1} parent=1 // pred_check_branch
      %13 = sbr.rel (0) target = $region5
    $region4: #{classifier_forward.1} parent=1 // pred_region
      %s15 = ssub.s32 2048, 128
      %16 = vsyncadd [#allocation3], %s15
      %s17 = sshll.u32 [#allocation2], 4
      %s18 = int_to_ptr.vmem [resolvable:$true] %s17
      %23 = dma.hbm_to_vmem [thread:$0]  %s0, 128, %s18, [#allocation3], 128, 128, 8
    $region5: #{classifier_forward.1} parent=1 // pred_fallthru
      _
    // Predicated region
    $region6: #{classifier_forward.1} parent=1 // pred_check
      _
    $region7: #{classifier_forward.1} parent=1 // pred_check_branch
      %25 = sbr.rel (0) target = $region9
    $region8: #{classifier_forward.1} parent=1 // pred_region
      _
    $region9: #{classifier_forward.1} parent=1 // pred_fallthru
      _
    // Predicated region
    $region10: #{classifier_forward.1} parent=1 // pred_check
      _
    $region11: #{classifier_forward.1} parent=1 // pred_check_branch
      %27 = sbr.rel (0) target = $region13
    $region12: #{classifier_forward.1} parent=1 // pred_region
      _
    $region13: #{classifier_forward.1} parent=1 // pred_fallthru
      _
    // Predicated region
    $region14: #{classifier_forward.1} parent=1 // pred_check
      _
    $region15: #{classifier_forward.1} parent=1 // pred_check_branch
      %29 = sbr.rel (0) target = $region17
    $region16: #{classifier_forward.1} parent=1 // pred_region
      _
    $region17: #{classifier_forward.1} parent=1 // pred_fallthru
      _
    // Predicated region
    $region18: #{classifier_forward.1} parent=1 // pred_check
      _
    $region19: #{classifier_forward.1} parent=1 // pred_check_branch
      %31 = sbr.rel (0) target = $region21
    $region20: #{classifier_forward.1} parent=1 // pred_region
      _
    $region21: #{classifier_forward.1} parent=1 // pred_fallthru
      _
    // Predicated region
    $region22: #{classifier_forward.1} parent=1 // pred_check
      _
    $region23: #{classifier_forward.1} parent=1 // pred_check_branch
      %33 = sbr.rel (0) target = $region25
    $region24: #{classifier_forward.1} parent=1 // pred_region
      %34 = dma.done [#allocation3], 2048
    $region25: #{classifier_forward.1} parent=1 // pred_fallthru
      _
    %v35 = vld [vmem:[%s1] sm:$0xff]
    %v36 = vld [vmem:[%s1 + $0x8] sm:$0xff]
    %v37 = vld [vmem:[#allocation2] sm:$0xff]
    %v38 = vld [vmem:[#allocation2 + $0x8] sm:$0xff]
    %v39 = vld [vmem:[#allocation2 + $0x10] sm:$0xff]
    %v40 = vld [vmem:[#allocation2 + $0x18] sm:$0xff]
    %v41 = vld [vmem:[#allocation2 + $0x20] sm:$0xff]
    %v42 = vld [vmem:[#allocation2 + $0x28] sm:$0xff]
    %v43 = vld [vmem:[#allocation2 + $0x30] sm:$0xff]
    %v44 = vld [vmem:[#allocation2 + $0x38] sm:$0xff]
    %v45 = vld [vmem:[#allocation2 + $0x40] sm:$0xff]
    %v46 = vld [vmem:[#allocation2 + $0x48] sm:$0xff]
    %v47 = vld [vmem:[#allocation2 + $0x50] sm:$0xff]
    %v48 = vld [vmem:[#allocation2 + $0x58] sm:$0xff]
    %v49 = vld [vmem:[#allocation2 + $0x60] sm:$0xff]
    %v50 = vld [vmem:[#allocation2 + $0x68] sm:$0xff]
    %v51 = vld [vmem:[#allocation2 + $0x70] sm:$0xff]
    %v52 = vld [vmem:[#allocation2 + $0x78] sm:$0xff]
    %v53 = vld [vmem:[%s2] sm:$0xff]
    %v54 = vld [vmem:[%s2 + $0x8] sm:$0xff]
    %56 = vset.pattern.permute.xlu0 0
    %57 = vperm.xlu0 %56, %v53
    %v58 = vpop.permute.xlu0 %57
    %61 = vset.pattern.permute.xlu0 0
    %62 = vperm.xlu0 %61, %v54
    %v63 = vpop.permute.xlu0 %62
    %vm65 = vcmask 261120
    %v67 = vsel %vm65, %v35, 0
    %v70 = vsel %vm65, %v36, 0
    %v73 = vsel %vm65, %v37, 0
    %v76 = vsel %vm65, %v38, 0
    %v79 = vsel %vm65, %v39, 0
    %v82 = vsel %vm65, %v40, 0
    %v85 = vsel %vm65, %v41, 0
    %v88 = vsel %vm65, %v42, 0
    %v91 = vsel %vm65, %v43, 0
    %v94 = vsel %vm65, %v44, 0
    %v97 = vsel %vm65, %v45, 0
    %v100 = vsel %vm65, %v46, 0
    %v103 = vsel %vm65, %v47, 0
    %v106 = vsel %vm65, %v48, 0
    %v109 = vsel %vm65, %v49, 0
    %v112 = vsel %vm65, %v50, 0
    %v115 = vsel %vm65, %v51, 0
    %v118 = vsel %vm65, %v52, 0
    %120 = vmatprep.subr.mxu0 0.0
    %121 = vmatpush1.xpose.msra.mxu0 %v118
    %122 = vmatprep.subr.mxu0 0.0
    %123 = vmatpush1.xpose.msra.mxu0 %v115
    %124 = vmatprep.subr.mxu0 0.0
    %125 = vmatpush1.xpose.msra.mxu0 %v112
    %126 = vmatprep.subr.mxu0 0.0
    %127 = vmatpush1.xpose.msra.mxu0 %v109
    %128 = vmatprep.subr.mxu0 0.0
    %129 = vmatpush1.xpose.msra.mxu0 %v106
    %130 = vmatprep.subr.mxu0 0.0
    %131 = vmatpush1.xpose.msra.mxu0 %v103
    %132 = vmatprep.subr.mxu0 0.0
    %133 = vmatpush1.xpose.msra.mxu0 %v100
    %134 = vmatprep.subr.mxu0 0.0
    %135 = vmatpush1.xpose.msra.mxu0 %v97
    %136 = vmatprep.subr.mxu0 0.0
    %137 = vmatpush1.xpose.msra.mxu0 %v94
    %138 = vmatprep.subr.mxu0 0.0
    %139 = vmatpush1.xpose.msra.mxu0 %v91
    %140 = vmatprep.subr.mxu0 0.0
    %141 = vmatpush1.xpose.msra.mxu0 %v88
    %142 = vmatprep.subr.mxu0 0.0
    %143 = vmatpush1.xpose.msra.mxu0 %v85
    %144 = vmatprep.subr.mxu0 0.0
    %145 = vmatpush1.xpose.msra.mxu0 %v82
    %146 = vmatprep.subr.mxu0 0.0
    %147 = vmatpush1.xpose.msra.mxu0 %v79
    %148 = vmatprep.subr.mxu0 0.0
    %149 = vmatpush1.xpose.msra.mxu0 %v76
    %150 = vmatprep.subr.mxu0 0.0
    %151 = vmatpush1.xpose.msra.mxu0 %v73
    %152 = vmatprep.subr.mxu0 0.0
    %153 = vmatpush2.xpose.msra.mxu0 0.0
    %154 = vmatprep.subr.mxu0 0.0
    %155 = vmatpush2.xpose.msra.mxu0 0.0
    %156 = vmatprep.subr.mxu0 0.0
    %157 = vmatpush2.xpose.msra.mxu0 0.0
    %158 = vmatprep.subr.mxu0 0.0
    %159 = vmatpush2.xpose.msra.mxu0 0.0
    %160 = vmatprep.subr.mxu0 0.0
    %161 = vmatpush2.xpose.msra.mxu0 0.0
    %162 = vmatprep.subr.mxu0 0.0
    %163 = vmatpush2.xpose.msra.mxu0 0.0
    %164 = vmatprep.subr.mxu0 0.0
    %165 = vmatpush2.xpose.msra.mxu0 0.0
    %166 = vmatprep.subr.mxu0 0.0
    %167 = vmatpush2.xpose.msra.mxu0 0.0
    %168 = vmatprep.subr.mxu0 0.0
    %169 = vmatpush2.xpose.msra.mxu0 0.0
    %170 = vmatprep.subr.mxu0 0.0
    %171 = vmatpush2.xpose.msra.mxu0 0.0
    %172 = vmatprep.subr.mxu0 0.0
    %173 = vmatpush2.xpose.msra.mxu0 0.0
    %174 = vmatprep.subr.mxu0 0.0
    %175 = vmatpush2.xpose.msra.mxu0 0.0
    %176 = vmatprep.subr.mxu0 0.0
    %177 = vmatpush2.xpose.msra.mxu0 0.0
    %178 = vmatprep.subr.mxu0 0.0
    %179 = vmatpush2.xpose.msra.mxu0 0.0
    %180 = vmatprep.subr.mxu0 0.0
    %181 = vmatpush2.xpose.msra.mxu0 0.0
    %182 = vmatprep.subr.mxu0 0.0
    %183 = vmatpush2.xpose.msra.mxu0 0.0
    %184 = vmatprep.mubr.f32.mxu0 0.0
    %185 = vmatmul.mubr.f32.gmra.mxu0 %v67
    %v186 = vpop.f32.mrf.mxu0
    %v187 = vadd.f32 %v58, %v186
    %v188 = vpop.f32.mrf.mxu0
    %189 = vmatprep.mubr.f32.mxu0 0.0
    %190 = vmatmul.mubr.f32.gmra.mxu0 %v70
    %v191 = vpop.f32.mrf.mxu0
    %v192 = vadd.f32 %v63, %v191
    %v193 = vpop.f32.mrf.mxu0
    %194 = vdwg.mxu0
    %v195 = vmul.f32 %v187, 0.5
    %v196 = vmul.f32 %v192, 0.5
    %v197 = vtanh.pop %v195
    %v198 = vtanh.pop %v196
    %v199 = vadd.f32 %v197, 1.0
    %v200 = vadd.f32 %v198, 1.0
    %v201 = vmul.f32 %v199, 0.5
    %v202 = vmul.f32 %v200, 0.5
    %v203 = vld [vmem:[%s3] sm:$0xf]
    %v204 = vld [vmem:[%s4] sm:$0xf]
    %206 = vset.pattern.permute.xlu0 0
    %207 = vperm.xlu0 %206, %v204
    %v208 = vpop.permute.xlu0 %207
    %vm210 = vcmask 130048
    %v212 = vsel %vm210, %v203, 0
    %214 = vmatprep.subr.mxu0 0.0
    %215 = vmatpush1.msra.mxu0 0.0
    %216 = vmatprep.subr.mxu0 0.0
    %217 = vmatpush1.msra.mxu0 0.0
    %218 = vmatprep.subr.mxu0 0.0
    %219 = vmatpush1.msra.mxu0 0.0
    %220 = vmatprep.subr.mxu0 0.0
    %221 = vmatpush1.msra.mxu0 0.0
    %222 = vmatprep.subr.mxu0 0.0
    %223 = vmatpush1.msra.mxu0 0.0
    %224 = vmatprep.subr.mxu0 0.0
    %225 = vmatpush1.msra.mxu0 0.0
    %226 = vmatprep.subr.mxu0 0.0
    %227 = vmatpush1.msra.mxu0 0.0
    %228 = vmatprep.subr.mxu0 0.0
    %229 = vmatpush1.msra.mxu0 0.0
    %230 = vmatprep.subr.mxu0 0.0
    %231 = vmatpush1.msra.mxu0 0.0
    %232 = vmatprep.subr.mxu0 0.0
    %233 = vmatpush1.msra.mxu0 0.0
    %234 = vmatprep.subr.mxu0 0.0
    %235 = vmatpush1.msra.mxu0 0.0
    %236 = vmatprep.subr.mxu0 0.0
    %237 = vmatpush1.msra.mxu0 0.0
    %238 = vmatprep.subr.mxu0 0.0
    %239 = vmatpush1.msra.mxu0 0.0
    %240 = vmatprep.subr.mxu0 0.0
    %241 = vmatpush1.msra.mxu0 0.0
    %242 = vmatprep.subr.mxu0 0.0
    %243 = vmatpush1.msra.mxu0 %v202
    %244 = vmatprep.subr.mxu0 0.0
    %245 = vmatpush1.msra.mxu0 %v201
    %246 = vmatprep.subr.mxu0 0.0
    %247 = vmatpush2.msra.mxu0 0.0
    %248 = vmatprep.subr.mxu0 0.0
    %249 = vmatpush2.msra.mxu0 0.0
    %250 = vmatprep.subr.mxu0 0.0
    %251 = vmatpush2.msra.mxu0 0.0
    %252 = vmatprep.subr.mxu0 0.0
    %253 = vmatpush2.msra.mxu0 0.0
    %254 = vmatprep.subr.mxu0 0.0
    %255 = vmatpush2.msra.mxu0 0.0
    %256 = vmatprep.subr.mxu0 0.0
    %257 = vmatpush2.msra.mxu0 0.0
    %258 = vmatprep.subr.mxu0 0.0
    %259 = vmatpush2.msra.mxu0 0.0
    %260 = vmatprep.subr.mxu0 0.0
    %261 = vmatpush2.msra.mxu0 0.0
    %262 = vmatprep.subr.mxu0 0.0
    %263 = vmatpush2.msra.mxu0 0.0
    %264 = vmatprep.subr.mxu0 0.0
    %265 = vmatpush2.msra.mxu0 0.0
    %266 = vmatprep.subr.mxu0 0.0
    %267 = vmatpush2.msra.mxu0 0.0
    %268 = vmatprep.subr.mxu0 0.0
    %269 = vmatpush2.msra.mxu0 0.0
    %270 = vmatprep.subr.mxu0 0.0
    %271 = vmatpush2.msra.mxu0 0.0
    %272 = vmatprep.subr.mxu0 0.0
    %273 = vmatpush2.msra.mxu0 0.0
    %274 = vmatprep.subr.mxu0 0.0
    %275 = vmatpush2.msra.mxu0 0.0
    %276 = vmatprep.subr.mxu0 0.0
    %277 = vmatpush2.msra.mxu0 0.0
    %278 = vmatprep.mubr.f32.mxu0 0.0
    %279 = vmatmul.mubr.f32.gmra.mxu0 %v212
    %v280 = vpop.f32.mrf.mxu0
    %v281 = vadd.f32 %v208, %v280
    %v282 = vpop.f32.mrf.mxu0
    %283 = vdwg.mxu0
    %vm284 = vcmask 1043456
    %v285 = vsel %vm284, %v281, -inf
    %v286 = vrot.slane %v285, 4
    %v287 = vmax.f32 %v285, %v286
    %v288 = vrot.slane %v287, 2
    %v289 = vmax.f32 %v287, %v288
    %v290 = vrot.slane %v289, 1
    %v291 = vmax.f32 %v289, %v290
    %v292 = vsub.f32 %v281, %v291
    %v293 = vmul.f32 %v292, 1.442695
    %v294 = vpow.pop %v293
    %v295 = vsel %vm284, %v294, 0.0
    %v296 = vrot.slane %v295, 4
    %v297 = vadd.f32 %v295, %v296
    %v298 = vrot.slane %v297, 2
    %v299 = vadd.f32 %v297, %v298
    %v300 = vrot.slane %v299, 1
    %v301 = vadd.f32 %v299, %v300
    %v302 = vrcp.pop %v301
    %v303 = vmul.f32 %v301, %v302
    %v304 = vsub.f32 2.0, %v303
    %v305 = vmul.f32 %v302, %v304
    %v306 = vmul.f32 %v294, %v305
    %307 = vst [vmem:[#allocation5] sm:$0xf] %v306
    // Predicated region
    $region26: #{classifier_forward.1} parent=1 // pred_check
      _
    $region27: #{classifier_forward.1} parent=1 // pred_check_branch
      %309 = sbr.rel (0) target = $region29
    $region28: #{classifier_forward.1} parent=1 // pred_region
      %s311 = ssub.s32 64, 64
      %312 = vsyncadd [#allocation4], %s311
      %s314 = sshll.u32 [#allocation5], 4
      %s315 = int_to_ptr.vmem [resolvable:$true] %s314
      %317 = dma.vmem_to_hbm [thread:$0]  %s315, 64, %s5, [#allocation4]
    $region29: #{classifier_forward.1} parent=1 // pred_fallthru
      _
    // Predicated region
    $region30: #{classifier_forward.1} parent=1 // pred_check
      _
    $region31: #{classifier_forward.1} parent=1 // pred_check_branch
      %319 = sbr.rel (0) target = $region33
    $region32: #{classifier_forward.1} parent=1 // pred_region
      %320 = dma.done [#allocation4], 64
    $region33: #{classifier_forward.1} parent=1 // pred_fallthru
      _
    %321 = vsyncpa [#allocation3], 1
    %322 = vsyncpa [#allocation4], 1

</llo_original>
